<compile_context>
chip_gen: v7x
topology: tpu7x:2x2x1
jax: 0.10.0
libtpu: 0.0.40
codegen_flags: <defaults>
</compile_context>

<pallas_src>
import functools

import jax
import jax.numpy as jnp
from jax.experimental import pallas as pl
from jax.experimental.pallas import tpu as pltpu


# ------------------------------ kernels -------------------------------------


def _fullk_kernel(x_ref, w_ref, b_ref, o_ref, *, compute_dtype):
    """Single-shot panel: full-K matmul + bias + approximate-GELU gate."""
    y = jnp.dot(
        x_ref[...].astype(compute_dtype),
        w_ref[...].astype(compute_dtype),
        preferred_element_type=jnp.float32,
    )
    y = y + b_ref[...].astype(jnp.float32)
    # y * sigmoid(1.702*y): exp lands on the EUP, divide becomes approx vrcp.
    gate = pl.reciprocal(1.0 + jnp.exp(-1.702 * y), approx=True)
    o_ref[...] = (y * gate).astype(o_ref.dtype)


def _ktiled_kernel(x_ref, w_ref, b_ref, o_ref, *scratch, compute_dtype):
    """K-tiled variant: accumulator resident across the (last) K grid axis."""
    # For f32 outputs the output block itself is the accumulator (index (i,j)
    # is constant across k), saving tm*tn*4 bytes of VMEM and an extra copy.
    acc_ref = scratch[0] if scratch else o_ref
    k = pl.program_id(2)

    @pl.when(k == 0)
    def _():
        acc_ref[...] = jnp.zeros_like(acc_ref)

    acc_ref[...] += jnp.dot(
        x_ref[...].astype(compute_dtype),
        w_ref[...].astype(compute_dtype),
        preferred_element_type=jnp.float32,
    )

    @pl.when(k == pl.num_programs(2) - 1)
    def _():
        y = acc_ref[...] + b_ref[...].astype(jnp.float32)
        gate = pl.reciprocal(1.0 + jnp.exp(-1.702 * y), approx=True)
        o_ref[...] = (y * gate).astype(o_ref.dtype)


# --------------------------- tile selection ----------------------------------


def _vmem_budget_bytes():
    cap = 64 * 1024 * 1024  # conservative fallback (v7x physical VMEM)
    try:
        info = pltpu.get_tpu_info()
        cap = int(getattr(info, "vmem_capacity_bytes", cap) or cap)
    except Exception:
        pass
    # Leave headroom for Mosaic internal scratch / semaphores:
    # ~48 MiB on v7x (64 MiB phys), ~96 MiB on v5e/v6e (128 MiB phys).
    return int(0.75 * cap)


def _dim_candidates(dim, prefs, align):
    # Full extent is always a legal block size; below that only `align`-aligned
    # sizes satisfy the Pallas (8, 128) block rule.
    return [dim] + [p for p in prefs if p < dim and p % align == 0]


def _k_candidates(k):
    # K tiles must divide K exactly (a ragged K tail would pollute the
    # accumulation) and be 128-aligned.
    return [p for p in (4096, 2048, 1024, 512, 256, 128) if p < k and k % p == 0]


def _choose_config(m, k, n, x_bytes, w_bytes, out_bytes, acc_in_out, budget):
    """Pick (btm, btn, btk, full_k, j_inner) minimizing HBM traffic in VMEM budget."""
    m_cands = _dim_candidates(m, (1024, 512, 256, 128, 64, 32, 16, 8), 8)
    n_cands = _dim_candidates(n, (2048, 1024, 512, 256, 128), 128)
    k_cands = [(k, True)] + [(p, False) for p in _k_candidates(k)]

    def footprint(btm, btn, btk, full_k):
        f = 2 * (btm * btk * x_bytes + btk * btn * w_bytes)  # dbl-buffered inputs
        f += 2 * btm * btn * out_bytes + 2 * btn * 4         # output tile + bias
        if not full_k and not acc_in_out:
            f += btm * btn * 4                               # f32 accumulator
        return f

    def cost(btm, btn, btk, full_k):
        num_i, num_j = pl.cdiv(m, btm), pl.cdiv(n, btn)
        reread_w = (num_i - 1) * k * n * w_bytes  # j innermost -> x panel resident
        reread_x = (num_j - 1) * m * k * x_bytes  # i innermost -> W panel resident
        hbm = m * k * x_bytes + k * n * w_bytes + min(reread_w, reread_x)
        steps = num_i * num_j * (1 if full_k else k // btk)
        key = (hbm, steps, 0 if full_k else 1, -(btm * btn))
        return key, reread_w <= reread_x

    best = None
    for btm in m_cands:
        for btn in n_cands:
            for btk, full_k in k_cands:
                if footprint(btm, btn, btk, full_k) > budget:
                    continue
                key, j_inner = cost(btm, btn, btk, full_k)
                if best is None or key < best[0]:
                    best = (key, btm, btn, btk, full_k, j_inner)

    if best is None:  # pathological shapes: fall back to smallest legal tiles
        btm, btn = m_cands[-1], n_cands[-1]
        ks = _k_candidates(k)
        btk, full_k = (ks[-1], False) if ks else (k, True)
        _, j_inner = cost(btm, btn, btk, full_k)
        return btm, btn, btk, full_k, j_inner

    _, btm, btn, btk, full_k, j_inner = best
    return btm, btn, btk, full_k, j_inner


# ------------------------------ wrapper --------------------------------------


def prepare_weight(w_t, compute_dtype=jnp.bfloat16):
    """One-time (init-time) weight cast so the per-call hot path does no HBM pass."""
    return w_t.astype(compute_dtype)


@functools.partial(jax.jit, static_argnames=("compute_dtype",))
def approximate_gelu(x, w_t, b, *, compute_dtype=jnp.bfloat16):
    """ApproximateGELU forward.

    x: (..., dim_in); w_t: (dim_in, dim_out) (ideally pre-cast via
    prepare_weight); b: (dim_out,).
    """
    *lead, dim_in = x.shape
    dim_out = w_t.shape[1]
    m = 1
    for d in lead:
        m *= d

    out_dtype = x.dtype
    x2 = x.reshape(m, dim_in)      # no dtype cast here (per-tile cast in-kernel)
    b2 = b.reshape(1, dim_out)

    x_bytes = jnp.dtype(x2.dtype).itemsize
    w_bytes = jnp.dtype(w_t.dtype).itemsize
    out_bytes = jnp.dtype(out_dtype).itemsize
    acc_in_out = jnp.dtype(out_dtype) == jnp.dtype(jnp.float32)

    budget = _vmem_budget_bytes()
    btm, btn, btk, full_k, j_inner = _choose_config(
        m, dim_in, dim_out, x_bytes, w_bytes, out_bytes, acc_in_out, budget
    )

    num_i, num_j = pl.cdiv(m, btm), pl.cdiv(dim_out, btn)

    if full_k:
        kernel = functools.partial(_fullk_kernel, compute_dtype=compute_dtype)
        if j_inner:
            grid = (num_i, num_j)
            x_map = lambda i, j: (i, 0)
            w_map = lambda i, j: (0, j)
            b_map = lambda i, j: (0, j)
            o_map = lambda i, j: (i, j)
        else:
            grid = (num_j, num_i)
            x_map = lambda j, i: (i, 0)
            w_map = lambda j, i: (0, j)
            b_map = lambda j, i: (0, j)
            o_map = lambda j, i: (i, j)
        scratch = []
        dims = ("parallel", "parallel")
        x_block = (btm, dim_in)
        w_block = (dim_in, btn)
    else:
        kernel = functools.partial(_ktiled_kernel, compute_dtype=compute_dtype)
        num_k = dim_in // btk
        if j_inner:
            grid = (num_i, num_j, num_k)
            x_map = lambda i, j, kk: (i, kk)
            w_map = lambda i, j, kk: (kk, j)
            b_map = lambda i, j, kk: (0, j)
            o_map = lambda i, j, kk: (i, j)
        else:
            grid = (num_j, num_i, num_k)
            x_map = lambda j, i, kk: (i, kk)
            w_map = lambda j, i, kk: (kk, j)
            b_map = lambda j, i, kk: (0, j)
            o_map = lambda j, i, kk: (i, j)
        scratch = [] if acc_in_out else [pltpu.VMEM((btm, btn), jnp.float32)]
        dims = ("parallel", "parallel", "arbitrary")
        x_block = (btm, btk)
        w_block = (btk, btn)

    reread = min(
        (num_i - 1) * dim_in * dim_out * w_bytes,
        (num_j - 1) * m * dim_in * x_bytes,
    )
    cost = pl.CostEstimate(
        flops=2 * m * dim_in * dim_out,
        transcendentals=m * dim_out,
        bytes_accessed=(
            m * dim_in * x_bytes
            + dim_in * dim_out * w_bytes
            + reread
            + dim_out * 4
            + m * dim_out * out_bytes
        ),
    )

    out = pl.pallas_call(
        kernel,
        out_shape=jax.ShapeDtypeStruct((m, dim_out), out_dtype),
        grid_spec=pltpu.PrefetchScalarGridSpec(
            num_scalar_prefetch=0,
            grid=grid,
            in_specs=[
                pl.BlockSpec(x_block, x_map),
                pl.BlockSpec(w_block, w_map),
                pl.BlockSpec((1, btn), b_map),
            ],
            out_specs=pl.BlockSpec((btm, btn), o_map),
            scratch_shapes=scratch,
        ),
        compiler_params=pltpu.CompilerParams(
            dimension_semantics=dims,
            # Always raise the scoped-VMEM cap (defaults: 16 MiB v5e,
            # 32 MiB v6e/v7x) so the large tiles chosen above actually fit.
            vmem_limit_bytes=int(budget),
        ),
        cost_estimate=cost,
    )(x2, w_t, b2)

    return out.reshape(*lead, dim_out)


def _reference(x, w_t, b):
    y = jnp.einsum("...i,io->...o", x, w_t) + b
    return y * jax.nn.sigmoid(1.702 * y)


if __name__ == "__main__":
    batch, seq, dim_in, dim_out = 2, 8, 32, 32

    key = jax.random.PRNGKey(0)
    kx, kw, kb = jax.random.split(key, 3)

    # Deterministic parameter init (shapes from nn.Linear(dim_in, dim_out)).
    # PyTorch stores weight as (dim_out, dim_in); we keep the transposed
    # (dim_in, dim_out) layout for the kernel.
    bound = 1.0 / (dim_in ** 0.5)
    w_t = jax.random.uniform(kw, (dim_in, dim_out), jnp.float32, -bound, bound)
    b = jax.random.uniform(kb, (dim_out,), jnp.float32, -bound, bound)
    x = jax.random.normal(kx, (batch, seq, dim_in), jnp.float32)

    # Hoisted, one-time weight cast (kept out of the per-call hot path).
    w_prepared = prepare_weight(w_t)

    out = approximate_gelu(x, w_prepared, b)
    out = jax.block_until_ready(out)

    ref = _reference(x, w_t, b)
    assert out.shape == (batch, seq, dim_out)
    # bf16 matmul operands (f32 accumulation) + approx reciprocal gate.
    max_err = float(jnp.max(jnp.abs(out.astype(jnp.float32) - ref)))
    assert jnp.allclose(out, ref, atol=2.5e-2, rtol=2.5e-2), max_err

    print("KERNEL_OK")
</pallas_src>

<mosaic_0001>
module attributes {stable_mosaic.version = 11 : i64} {
  func.func @_fullk_kernel(%arg0: i32, %arg1: i32, %arg2: memref<16x32xf32, #tpu.memory_space<vmem>>, %arg3: memref<32x32xbf16, #tpu.memory_space<vmem>>, %arg4: memref<1x32xf32, #tpu.memory_space<vmem>>, %arg5: memref<16x32xf32, #tpu.memory_space<vmem>>) attributes {dimension_semantics = [#tpu.dimension_semantics<parallel>, #tpu.dimension_semantics<parallel>], iteration_bounds = array<i64: 1, 1>, scalar_prefetch = 0 : i64, scratch_operands = 0 : i64, tpu.core_type = #tpu.core_type<tc>, window_params = [{transform_indices = @transform_0, window_bounds = array<i64: 16, 32>}, {transform_indices = @transform_1, window_bounds = array<i64: 32, 32>}, {transform_indices = @transform_2, window_bounds = array<i64: 1, 32>}, {transform_indices = @transform_3, window_bounds = array<i64: 16, 32>}]} {
    %c0 = arith.constant 0 : index
    %c0_0 = arith.constant 0 : index
    %0 = vector.load %arg2[%c0, %c0_0] : memref<16x32xf32, #tpu.memory_space<vmem>>, vector<16x32xf32>
    %1 = arith.truncf %0 : vector<16x32xf32> to vector<16x32xbf16>
    %c0_1 = arith.constant 0 : index
    %c0_2 = arith.constant 0 : index
    %2 = vector.load %arg3[%c0_1, %c0_2] : memref<32x32xbf16, #tpu.memory_space<vmem>>, vector<32x32xbf16>
    %cst = arith.constant dense<0.000000e+00> : vector<16x32xf32>
    %3 = tpu.matmul %1, %2, %cst {dimension_numbers = #tpu.dot_dimension_numbers<[1], [0], [0], [1], [0, 0, 1, 1], [], []>} : vector<16x32xbf16>, vector<32x32xbf16>, vector<16x32xf32> -> vector<16x32xf32>
    %c0_3 = arith.constant 0 : index
    %c0_4 = arith.constant 0 : index
    %4 = vector.load %arg4[%c0_3, %c0_4] : memref<1x32xf32, #tpu.memory_space<vmem>>, vector<1x32xf32>
    %5 = vector.broadcast %4 : vector<1x32xf32> to vector<16x32xf32>
    %6 = arith.addf %3, %5 : vector<16x32xf32>
    %cst_5 = arith.constant -1.702000e+00 : f32
    %7 = vector.broadcast %cst_5 : f32 to vector<16x32xf32>
    %8 = arith.mulf %7, %6 : vector<16x32xf32>
    %9 = math.exp %8 : vector<16x32xf32>
    %cst_6 = arith.constant 1.000000e+00 : f32
    %10 = vector.broadcast %cst_6 : f32 to vector<16x32xf32>
    %11 = arith.addf %10, %9 : vector<16x32xf32>
    %12 = tpu.reciprocal %11 {approx = true} : vector<16x32xf32> -> vector<16x32xf32>
    %13 = arith.mulf %6, %12 : vector<16x32xf32>
    %c0_7 = arith.constant 0 : index
    %c0_8 = arith.constant 0 : index
    %14 = vector.load %arg5[%c0_7, %c0_8] : memref<16x32xf32, #tpu.memory_space<vmem>>, vector<16x32xf32>
    tpu.vector_store %arg5[%c0_7, %c0_8], %13 {strides = array<i32>} : memref<16x32xf32, #tpu.memory_space<vmem>>, vector<16x32xf32>,
    return
  }
  func.func @transform_0(%arg0: i32, %arg1: i32) -> (i32, i32) {
    %c0_i32 = arith.constant 0 : i32
    %c0_i32_0 = arith.constant 0 : i32
    return %arg0, %c0_i32 : i32, i32
  }
  func.func @transform_1(%arg0: i32, %arg1: i32) -> (i32, i32) {
    %c0_i32 = arith.constant 0 : i32
    %c0_i32_0 = arith.constant 0 : i32
    return %c0_i32, %arg1 : i32, i32
  }
  func.func @transform_2(%arg0: i32, %arg1: i32) -> (i32, i32) {
    %c0_i32 = arith.constant 0 : i32
    %c0_i32_0 = arith.constant 0 : i32
    return %c0_i32, %arg1 : i32, i32
  }
  func.func @transform_3(%arg0: i32, %arg1: i32) -> (i32, i32) {
    %c0_i32 = arith.constant 0 : i32
    return %arg0, %arg1 : i32, i32
  }
}

</mosaic_0001>

<llo_original>
// kernel: approximate_gelu.1
$region0: #{approximate_gelu.1}
  #allocation0 [shape = 'u32[]', space=smem, size = 0x4, offset = 0x4, fixed_abs, tag = 'smem constant byte address 0x4 - core index']
  #allocation1 [shape = 'u32[144,128]{1,0:T(1,128)}', space=vmem, size = 0x12000, scoped, tag = 'internal scratch']
  %s0 = inlined_call_operand.hbm [shape: f32[16,32], index: 0, kind: input, shape index: {}]
  %s1 = inlined_call_operand.hbm [shape: bf16[32,32], index: 1, kind: input, shape index: {}]
  %s2 = inlined_call_operand.vmem [shape: f32[1,32], index: 2, kind: input, shape index: {}]
  %s3 = inlined_call_operand.hbm [shape: f32[16,32], index: 3, kind: output, shape index: {}]
  %s4 = sld [smem:[#allocation0]]
  $region30: #{approximate_gelu.1} parent=0
    _
  %s6 = ssub.s32 1, %s4
  %s7 = scalar_select 0, %s6, %s4
  $region1: #{approximate_gelu.1} parent=0
    #allocation2 [shape = 'u8[8192]{0}', space=vmem, size = 0x2000, scoped, tag = 'input window, operand 0, single buffered']
    #allocation3 [shape = 's32[1]{0}', space=sflag, size = 0x4, scoped, tag = 'scoped memory for approximate_gelu.1']
    #allocation4 [shape = 's32[1]{0}', space=sflag, size = 0x4, scoped, tag = 'scoped memory for approximate_gelu.1']
    #allocation5 [shape = 'u8[8192]{0}', space=vmem, size = 0x2000, scoped, tag = 'input window, operand 1, single buffered']
    #allocation6 [shape = 's32[1]{0}', space=sflag, size = 0x4, scoped, tag = 'scoped memory for approximate_gelu.1']
    #allocation7 [shape = 'u8[8192]{0}', space=vmem, size = 0x2000, scoped, tag = 'output window, operand 0, single buffered']
    %8 = vsyncpa [#allocation3], 0
    %9 = vsyncpa [#allocation6], 0
    %10 = vsyncpa [#allocation4], 0
    // Predicated region
    $region2: #{approximate_gelu.1} parent=1 // pred_check
      _
    $region3: #{approximate_gelu.1} parent=1 // pred_check_branch
      %12 = sbr.rel (0) target = $region5
    $region4: #{approximate_gelu.1} parent=1 // pred_region
      %s14 = ssub.s32 256, 256
      %15 = vsyncadd [#allocation3], %s14
      %s16 = sshll.u32 [#allocation2], 4
      %s17 = int_to_ptr.vmem [resolvable:$true] %s16
      %22 = dma.hbm_to_vmem [thread:$0]  %s0, 256, %s17, [#allocation3], 128, 128, 8
    $region5: #{approximate_gelu.1} parent=1 // pred_fallthru
      _
    // Predicated region
    $region6: #{approximate_gelu.1} parent=1 // pred_check
      _
    $region7: #{approximate_gelu.1} parent=1 // pred_check_branch
      %24 = sbr.rel (0) target = $region9
    $region8: #{approximate_gelu.1} parent=1 // pred_region
      %s26 = ssub.s32 256, 256
      %27 = vsyncadd [#allocation6], %s26
      %s28 = sshll.u32 [#allocation5], 4
      %s29 = int_to_ptr.vmem [resolvable:$true] %s28
      %34 = dma.hbm_to_vmem [thread:$0]  %s1, 256, %s29, [#allocation6], 64, 64, 4
    $region9: #{approximate_gelu.1} parent=1 // pred_fallthru
      _
    // Predicated region
    $region10: #{approximate_gelu.1} parent=1 // pred_check
      _
    $region11: #{approximate_gelu.1} parent=1 // pred_check_branch
      %36 = sbr.rel (0) target = $region13
    $region12: #{approximate_gelu.1} parent=1 // pred_region
      _
    $region13: #{approximate_gelu.1} parent=1 // pred_fallthru
      _
    // Predicated region
    $region14: #{approximate_gelu.1} parent=1 // pred_check
      _
    $region15: #{approximate_gelu.1} parent=1 // pred_check_branch
      %38 = sbr.rel (0) target = $region17
    $region16: #{approximate_gelu.1} parent=1 // pred_region
      %39 = dma.done [#allocation3], 256
    $region17: #{approximate_gelu.1} parent=1 // pred_fallthru
      _
    // Predicated region
    $region18: #{approximate_gelu.1} parent=1 // pred_check
      _
    $region19: #{approximate_gelu.1} parent=1 // pred_check_branch
      %41 = sbr.rel (0) target = $region21
    $region20: #{approximate_gelu.1} parent=1 // pred_region
      %42 = dma.done [#allocation6], 256
    $region21: #{approximate_gelu.1} parent=1 // pred_fallthru
      _
    %v44 = vld [vmem:[#allocation2] sm:$0xff]
    %v45 = vld [vmem:[#allocation2 + $0x8] sm:$0xff]
    %v46 = vpack.c.bf16 %v45, %v44
    %v47 = vld [vmem:[#allocation5] sm:$0xf]
    %v48 = vld [vmem:[#allocation5 + $0x4] sm:$0xf]
    %v49 = vld [vmem:[#allocation5 + $0x8] sm:$0xf]
    %v50 = vld [vmem:[#allocation5 + $0xc] sm:$0xf]
    %v51 = vld [vmem:[%s2] sm:$0x1]
    %v53 = vlaneseq
    %v54 = vshrl.u32 %v53, 7
    %v55 = vsub.s32 0, %v54
    %v56 = vrot.slane %v51, %v55
    %v62 = vunpack.c.l.b16 %v47
    %v63 = vunpack.c.l.b16 %v48
    %v64 = vunpack.c.l.b16 %v49
    %v65 = vunpack.c.l.b16 %v50
    %v66 = vpack.c.b16 %v63, %v62
    %v67 = vpack.c.b16 %v65, %v64
    %vm70 = vcmask 261120
    %v72 = vsel %vm70, %v46, 0
    %74 = vmatprep.subr.bf16.mxu0 0
    %75 = vmatpush1.bf16.msra.mxu0 %v66
    %76 = vmatprep.subr.bf16.mxu0 0
    %77 = vmatpush1.bf16.msra.mxu0 %v67
    %78 = vmatprep.subr.bf16.mxu0 0
    %79 = vmatpush1.bf16.msra.mxu0 0
    %80 = vmatprep.subr.bf16.mxu0 0
    %81 = vmatpush1.bf16.msra.mxu0 0
    %82 = vmatprep.subr.bf16.mxu0 0
    %83 = vmatpush1.bf16.msra.mxu0 0
    %84 = vmatprep.subr.bf16.mxu0 0
    %85 = vmatpush1.bf16.msra.mxu0 0
    %86 = vmatprep.subr.bf16.mxu0 0
    %87 = vmatpush1.bf16.msra.mxu0 0
    %88 = vmatprep.subr.bf16.mxu0 0
    %89 = vmatpush1.bf16.msra.mxu0 0
    %90 = vmatprep.subr.bf16.mxu0 0
    %91 = vmatpush1.bf16.msra.mxu0 0
    %92 = vmatprep.subr.bf16.mxu0 0
    %93 = vmatpush1.bf16.msra.mxu0 0
    %94 = vmatprep.subr.bf16.mxu0 0
    %95 = vmatpush1.bf16.msra.mxu0 0
    %96 = vmatprep.subr.bf16.mxu0 0
    %97 = vmatpush1.bf16.msra.mxu0 0
    %98 = vmatprep.subr.bf16.mxu0 0
    %99 = vmatpush1.bf16.msra.mxu0 0
    %100 = vmatprep.subr.bf16.mxu0 0
    %101 = vmatpush1.bf16.msra.mxu0 0
    %102 = vmatprep.subr.bf16.mxu0 0
    %103 = vmatpush1.bf16.msra.mxu0 0
    %104 = vmatprep.subr.bf16.mxu0 0
    %105 = vmatpush1.bf16.msra.mxu0 0
    %106 = vmatprep.mubr.bf16.mxu0 0
    %107 = vmatmul.mubr.bf16.gmra.mrb[0].mxu0 %v72
    %v108 = vpop.f32.mrb[0].mxu0
    %v109 = vadd.f32 %v56, %v108
    %v110 = vpop.f32.mrb[0].mxu0
    %v111 = vpop.f32.mrb[0].mxu0
    %v112 = vadd.f32 %v56, %v111
    %v113 = vpop.f32.mrb[0].mxu0
    %114 = vdwg.mxu0
    %v115 = vmul.f32 %v109, -1.702
    %v116 = vmul.f32 %v112, -1.702
    %v117 = vmul.f32 %v115, 1.442695
    %v118 = vpow.pop %v117
    %v119 = vmul.f32 %v116, 1.442695
    %v120 = vpow.pop %v119
    %v121 = vadd.f32 %v118, 1.0
    %v122 = vadd.f32 %v120, 1.0
    %v123 = vrcp.pop %v121
    %v124 = vrcp.pop %v122
    %v125 = vmul.f32 %v109, %v123
    %v126 = vmul.f32 %v112, %v124
    %127 = vst.msk [vmem:[#allocation7] sm:$0xff] %vm70, %v125
    %128 = vst.msk [vmem:[#allocation7 + $0x8] sm:$0xff] %vm70, %v126
    // Predicated region
    $region22: #{approximate_gelu.1} parent=1 // pred_check
      _
    $region23: #{approximate_gelu.1} parent=1 // pred_check_branch
      %130 = sbr.rel (0) target = $region25
    $region24: #{approximate_gelu.1} parent=1 // pred_region
      %s132 = ssub.s32 256, 256
      %133 = vsyncadd [#allocation4], %s132
      %s134 = sshll.u32 [#allocation7], 4
      %s135 = int_to_ptr.vmem [resolvable:$true] %s134
      %140 = dma.vmem_to_hbm [thread:$0]  %s135, 256, %s3, [#allocation4], 128, 128, 8
    $region25: #{approximate_gelu.1} parent=1 // pred_fallthru
      _
    // Predicated region
    $region26: #{approximate_gelu.1} parent=1 // pred_check
      _
    $region27: #{approximate_gelu.1} parent=1 // pred_check_branch
      %142 = sbr.rel (0) target = $region29
    $region28: #{approximate_gelu.1} parent=1 // pred_region
      %143 = dma.done [#allocation4], 256
    $region29: #{approximate_gelu.1} parent=1 // pred_fallthru
      _
    %144 = vsyncpa [#allocation3], 1
    %145 = vsyncpa [#allocation6], 1
    %146 = vsyncpa [#allocation4], 1

</llo_original>
